<compile_context>
chip_gen: v6e
topology: v6e:2x2x1
jax: 0.10.0
libtpu: 0.0.40
codegen_flags: <defaults>
</compile_context>

<pallas_src>
import functools

import jax
import jax.numpy as jnp
from jax.experimental import pallas as pl
from jax.experimental.pallas import tpu as pltpu

PRIMITIVES = ("skip", "conv1x1_a", "conv1x1_b", "conv1x1_c")
NUM_OPS = len(PRIMITIVES)

_LANE_CHUNK = 2048  # inner compute chunk (lanes); DMA tiles are multiples of it


def _mixedop_kernel(x_ref, w_ref, b_ref, post_ref, skip_ref, o_ref, *,
                    b_blk, lane_chunk):
    """Fused mixed-op for one (B_blk, C, tile_m) tile (spatial dim on lanes).

    x_ref:    (B_blk, C_in, TM)   VMEM  activations (lane axis = spatial rows)
    w_ref:    (K*C_out, C_in)     VMEM  in-mask-folded batched 1x1 weights (f32)
    b_ref:    (K*C_out, 1)        VMEM  batched biases (f32)
    post_ref: (K*C_out, 1)        VMEM  post-ReLU scale = weights[k]*r0*r1*out_mask
    skip_ref: (C_out, 1)          VMEM  weights[0]*r0*r1*out_mask (identity op)
    o_ref:    (B_blk, C_out, TM)  VMEM
    """
    c_out = o_ref.shape[1]
    tm = o_ref.shape[2]
    n_chunks = tm // lane_chunk

    w = w_ref[...]        # resident across the whole tile
    b = b_ref[...]
    post = post_ref[...]
    skip = skip_ref[...]

    for bi in range(b_blk):                       # static unroll (small)
        for ci in range(n_chunks):                # static unroll (<= 16)
            lo = ci * lane_chunk
            x = x_ref[bi, :, lo:lo + lane_chunk].astype(jnp.float32)  # (C_in, chunk)

            # All K candidate 1x1 convs in a single MXU push.
            y = jnp.dot(w, x, preferred_element_type=jnp.float32)     # (K*C_out, chunk)

            acc = skip * x                         # skip / identity op (C_in == C_out)
            for k in range(NUM_OPS - 1):           # fused bias+ReLU+scale+accumulate
                r0, r1 = k * c_out, (k + 1) * c_out
                acc = acc + post[r0:r1] * jnp.maximum(y[r0:r1] + b[r0:r1], 0.0)

            o_ref[bi, :, lo:lo + lane_chunk] = acc.astype(o_ref.dtype)


def _select_ratio(theta, wml):
    idx = jnp.argmax(theta)
    return wml[idx], theta[idx]


def _choose_tiling(hw, max_tile_m):
    """Returns (tile_m, lane_chunk). tile_m is a multiple of lane_chunk."""
    if hw <= _LANE_CHUNK:
        return hw, hw                                   # single full-extent tile
    max_tile_m = max(_LANE_CHUNK, (max_tile_m // _LANE_CHUNK) * _LANE_CHUNK)
    tile_m = min(max_tile_m, (hw // _LANE_CHUNK) * _LANE_CHUNK)
    return tile_m, _LANE_CHUNK


def _pick_batch_block(n, n_m_tiles, tile_m, target_lanes=8192, max_blk=16,
                      min_steps=2):
    """Largest divisor of n (<= max_blk) giving ~target_lanes/step, >= min_steps."""
    want = max(1, min(max_blk, target_lanes // max(tile_m, 1)))
    best = 1
    for d in range(1, n + 1):
        if n % d or d > want:
            continue
        if d == 1 or (n // d) * n_m_tiles >= min_steps:
            best = d
    return best


def mixed_op_forward(x_nchw, weights, thetas, conv_w, conv_b, width_mult_list,
                     max_tile_m=32768, io_dtype=None):
    """JAX/Pallas equivalent of MixedOp.forward (thetas given as arrays).

    io_dtype: optional streaming dtype for activations/outputs (e.g. bf16);
    params stay f32 and the matmul accumulates in f32.
    """
    N, C_in, H, W = x_nchw.shape
    K = NUM_OPS - 1
    C_out = conv_w.shape[-1]
    assert C_in == C_out, "identity (skip) branch assumes C_in == C_out"
    wml = jnp.asarray(width_mult_list, jnp.float32)

    ratio0, r_score0 = _select_ratio(thetas[0], wml)
    ratio1, r_score1 = _select_ratio(thetas[1], wml)

    n_in = jnp.round(C_in * ratio0).astype(jnp.int32)
    n_out = jnp.round(C_out * ratio1).astype(jnp.int32)
    in_mask = (jnp.arange(C_in) < n_in).astype(jnp.float32)      # (C_in,)
    out_mask = (jnp.arange(C_out) < n_out).astype(jnp.float32)   # (C_out,)

    # per-op scale = architecture weight * r_score0 * r_score1
    scales = weights.astype(jnp.float32) * r_score0 * r_score1   # (NUM_OPS,)

    # Fold ONLY the {0,1} input-channel mask into the weights (always valid);
    # per-op scales + out_mask are applied post-ReLU inside the kernel.
    w_fold = conv_w.astype(jnp.float32) * in_mask[None, :, None]           # (K,C_in,C_out)
    w_big = jnp.transpose(w_fold, (0, 2, 1)).reshape(K * C_out, C_in)      # (K*C_out,C_in)
    b_big = conv_b.astype(jnp.float32).reshape(K * C_out, 1)               # (K*C_out,1)
    post_col = (scales[1:, None] * out_mask[None, :]).reshape(K * C_out, 1)
    skip_col = (scales[0] * out_mask).reshape(C_out, 1)                    # (C_out,1)

    # Spatial dim on lanes, no pad / slice: Pallas masks the ragged last block.
    HW = H * W
    io_dt = jnp.dtype(io_dtype) if io_dtype is not None else x_nchw.dtype
    x3 = x_nchw.reshape(N, C_in, HW)
    if x3.dtype != io_dt:
        x3 = x3.astype(io_dt)

    tile_m, lane_chunk = _choose_tiling(HW, max_tile_m)
    n_m_tiles = pl.cdiv(HW, tile_m)
    b_blk = _pick_batch_block(N, n_m_tiles, tile_m)
    grid = (pl.cdiv(N, b_blk), n_m_tiles)

    # VMEM budget: double-buffered x/out blocks + matmul temp + params.
    itm = jnp.dtype(io_dt).itemsize
    x_blk_bytes = b_blk * C_in * tile_m * itm
    o_blk_bytes = b_blk * C_out * tile_m * itm
    y_bytes = K * C_out * lane_chunk * 4
    param_bytes = (K * C_out * C_in + 2 * K * C_out + C_out) * 4
    vmem_est = 2 * (x_blk_bytes + o_blk_bytes) + y_bytes + 2 * param_bytes
    vmem_limit = int(min(64 * 2 ** 20, max(2 * vmem_est, 24 * 2 ** 20)))

    cost = pl.CostEstimate(
        flops=int(N * HW * (2 * K * C_out * C_in + 13 * C_out)),
        transcendentals=0,
        bytes_accessed=int(N * HW * (C_in + C_out) * itm + 8 * param_bytes),
    )

    kernel = functools.partial(_mixedop_kernel, b_blk=b_blk,
                               lane_chunk=lane_chunk)

    out3 = pl.pallas_call(
        kernel,
        out_shape=jax.ShapeDtypeStruct((N, C_out, HW), io_dt),
        grid=grid,
        in_specs=[
            pl.BlockSpec((b_blk, C_in, tile_m), lambda n, i: (n, 0, i)),
            pl.BlockSpec((K * C_out, C_in), lambda n, i: (0, 0)),
            pl.BlockSpec((K * C_out, 1), lambda n, i: (0, 0)),
            pl.BlockSpec((K * C_out, 1), lambda n, i: (0, 0)),
            pl.BlockSpec((C_out, 1), lambda n, i: (0, 0)),
        ],
        out_specs=pl.BlockSpec((b_blk, C_out, tile_m), lambda n, i: (n, 0, i)),
        compiler_params=pltpu.CompilerParams(
            dimension_semantics=("parallel", "parallel"),
            vmem_limit_bytes=vmem_limit),
        cost_estimate=cost,
    )(x3, w_big, b_big, post_col, skip_col)

    return out3.reshape(N, C_out, H, W)


def mixed_op_reference(x_nchw, weights, thetas, conv_w, conv_b, width_mult_list):
    """Pure-JAX reference of the same semantics for verification."""
    N, C_in, H, W = x_nchw.shape
    C_out = conv_w.shape[-1]
    wml = jnp.asarray(width_mult_list, jnp.float32)
    ratio0, r_score0 = _select_ratio(thetas[0], wml)
    ratio1, r_score1 = _select_ratio(thetas[1], wml)
    n_in = jnp.round(C_in * ratio0).astype(jnp.int32)
    n_out = jnp.round(C_out * ratio1).astype(jnp.int32)
    in_mask = (jnp.arange(C_in) < n_in).astype(jnp.float32)
    out_mask = (jnp.arange(C_out) < n_out).astype(jnp.float32)

    x = jnp.transpose(x_nchw, (0, 2, 3, 1)).astype(jnp.float32)     # NHWC
    result = weights[0] * r_score0 * r_score1 * (x * out_mask)      # skip op
    xp = x * in_mask
    for k in range(1, NUM_OPS):
        y = jnp.einsum("nhwc,cd->nhwd", xp, conv_w[k - 1]) + conv_b[k - 1]
        y = jnp.maximum(y, 0.0) * out_mask
        result = result + weights[k] * r_score0 * r_score1 * y
    return result.transpose(0, 3, 1, 2).astype(x_nchw.dtype)


if __name__ == "__main__":
    # Small shapes consistent with MixedOp(C_in=C_out=8, stride=1)
    N, C_in, C_out, H, W = 4, 8, 8, 16, 16
    width_mult_list = [0.5, 0.75, 1.0]

    key = jax.random.PRNGKey(0)
    kx, kw, kb, kt0, kt1, ka = jax.random.split(key, 6)

    x = jax.random.normal(kx, (N, C_in, H, W), jnp.float32)
    conv_w = 0.1 * jax.random.normal(kw, (NUM_OPS - 1, C_in, C_out), jnp.float32)
    conv_b = 0.01 * jax.random.normal(kb, (NUM_OPS - 1, C_out), jnp.float32)

    # architecture weights over ops, and width thetas (tensor branch of forward)
    weights = jax.nn.softmax(jax.random.normal(ka, (NUM_OPS,), jnp.float32))
    theta0 = jax.nn.softmax(jax.random.normal(kt0, (len(width_mult_list),), jnp.float32))
    theta1 = jax.nn.softmax(jax.random.normal(kt1, (len(width_mult_list),), jnp.float32))
    thetas = (theta0, theta1)

    ref = mixed_op_reference(x, weights, thetas, conv_w, conv_b, width_mult_list)

    # f32 streaming path (bit-exact-ish vs reference)
    fwd = jax.jit(functools.partial(mixed_op_forward,
                                    width_mult_list=width_mult_list))
    out = jax.block_until_ready(fwd(x, weights, thetas, conv_w, conv_b))
    assert out.shape == (N, C_out, H, W) and out.dtype == x.dtype
    assert jnp.allclose(out, ref, atol=1e-4, rtol=1e-4), "f32 mismatch vs reference"

    # bf16 streaming path (halves HBM traffic; f32 accumulation inside)
    fwd_bf16 = jax.jit(functools.partial(mixed_op_forward,
                                         width_mult_list=width_mult_list,
                                         io_dtype=jnp.bfloat16))
    out_bf = jax.block_until_ready(fwd_bf16(x, weights, thetas, conv_w, conv_b))
    assert out_bf.dtype == jnp.bfloat16
    assert jnp.allclose(out_bf.astype(jnp.float32), ref, atol=6e-2, rtol=6e-2), \
        "bf16 mismatch vs reference"

    print("KERNEL_OK")
</pallas_src>

<mosaic_0001>
module attributes {stable_mosaic.version = 11 : i64} {
  func.func @_mixedop_kernel(%arg0: i32, %arg1: i32, %arg2: memref<2x8x256xf32, #tpu.memory_space<vmem>>, %arg3: memref<24x8xf32, #tpu.memory_space<vmem>>, %arg4: memref<24x1xf32, #tpu.memory_space<vmem>>, %arg5: memref<24x1xf32, #tpu.memory_space<vmem>>, %arg6: memref<8x1xf32, #tpu.memory_space<vmem>>, %arg7: memref<2x8x256xf32, #tpu.memory_space<vmem>>) attributes {dimension_semantics = [#tpu.dimension_semantics<parallel>, #tpu.dimension_semantics<parallel>], iteration_bounds = array<i64: 2, 1>, scalar_prefetch = 0 : i64, scratch_operands = 0 : i64, tpu.core_type = #tpu.core_type<tc>, window_params = [{transform_indices = @transform_0, window_bounds = array<i64: 2, 8, 256>}, {pipeline_mode = #tpu.pipeline_mode<synchronous>, transform_indices = @transform_1, window_bounds = array<i64: 24, 8>}, {pipeline_mode = #tpu.pipeline_mode<synchronous>, transform_indices = @transform_2, window_bounds = array<i64: 24, 1>}, {pipeline_mode = #tpu.pipeline_mode<synchronous>, transform_indices = @transform_3, window_bounds = array<i64: 24, 1>}, {pipeline_mode = #tpu.pipeline_mode<synchronous>, transform_indices = @transform_4, window_bounds = array<i64: 8, 1>}, {transform_indices = @transform_5, window_bounds = array<i64: 2, 8, 256>}]} {
    %c0 = arith.constant 0 : index
    %c0_0 = arith.constant 0 : index
    %0 = vector.load %arg3[%c0, %c0_0] : memref<24x8xf32, #tpu.memory_space<vmem>>, vector<24x8xf32>
    %c0_1 = arith.constant 0 : index
    %c0_2 = arith.constant 0 : index
    %1 = vector.load %arg4[%c0_1, %c0_2] : memref<24x1xf32, #tpu.memory_space<vmem>>, vector<24x1xf32>
    %c0_3 = arith.constant 0 : index
    %c0_4 = arith.constant 0 : index
    %2 = vector.load %arg5[%c0_3, %c0_4] : memref<24x1xf32, #tpu.memory_space<vmem>>, vector<24x1xf32>
    %c0_5 = arith.constant 0 : index
    %c0_6 = arith.constant 0 : index
    %3 = vector.load %arg6[%c0_5, %c0_6] : memref<8x1xf32, #tpu.memory_space<vmem>>, vector<8x1xf32>
    %c0_7 = arith.constant 0 : index
    %c0_8 = arith.constant 0 : index
    %c0_9 = arith.constant 0 : index
    %4 = vector.load %arg2[%c0_7, %c0_8, %c0_9] : memref<2x8x256xf32, #tpu.memory_space<vmem>>, vector<1x8x256xf32>
    %5 = vector.shape_cast %4 : vector<1x8x256xf32> to vector<8x256xf32>
    %cst = arith.constant dense<0.000000e+00> : vector<24x256xf32>
    %6 = tpu.matmul %0, %5, %cst {dimension_numbers = #tpu.dot_dimension_numbers<[1], [0], [0], [1], [0, 0, 1, 1], [], []>} : vector<24x8xf32>, vector<8x256xf32>, vector<24x256xf32> -> vector<24x256xf32>
    %7 = vector.broadcast %3 : vector<8x1xf32> to vector<8x256xf32>
    %8 = arith.mulf %7, %5 : vector<8x256xf32>
    %9 = vector.extract_strided_slice %2 {offsets = [0, 0], sizes = [8, 1], strides = [1, 1]} : vector<24x1xf32> to vector<8x1xf32>
    %10 = vector.extract_strided_slice %6 {offsets = [0, 0], sizes = [8, 256], strides = [1, 1]} : vector<24x256xf32> to vector<8x256xf32>
    %11 = vector.extract_strided_slice %1 {offsets = [0, 0], sizes = [8, 1], strides = [1, 1]} : vector<24x1xf32> to vector<8x1xf32>
    %12 = vector.broadcast %11 : vector<8x1xf32> to vector<8x256xf32>
    %13 = arith.addf %10, %12 : vector<8x256xf32>
    %cst_10 = arith.constant 0.000000e+00 : f32
    %14 = vector.broadcast %cst_10 : f32 to vector<8x256xf32>
    %15 = arith.maximumf %13, %14 : vector<8x256xf32>
    %16 = vector.broadcast %9 : vector<8x1xf32> to vector<8x256xf32>
    %17 = arith.mulf %16, %15 : vector<8x256xf32>
    %18 = arith.addf %8, %17 : vector<8x256xf32>
    %19 = vector.extract_strided_slice %2 {offsets = [8, 0], sizes = [8, 1], strides = [1, 1]} : vector<24x1xf32> to vector<8x1xf32>
    %20 = vector.extract_strided_slice %6 {offsets = [8, 0], sizes = [8, 256], strides = [1, 1]} : vector<24x256xf32> to vector<8x256xf32>
    %21 = vector.extract_strided_slice %1 {offsets = [8, 0], sizes = [8, 1], strides = [1, 1]} : vector<24x1xf32> to vector<8x1xf32>
    %22 = vector.broadcast %21 : vector<8x1xf32> to vector<8x256xf32>
    %23 = arith.addf %20, %22 : vector<8x256xf32>
    %cst_11 = arith.constant 0.000000e+00 : f32
    %24 = vector.broadcast %cst_11 : f32 to vector<8x256xf32>
    %25 = arith.maximumf %23, %24 : vector<8x256xf32>
    %26 = vector.broadcast %19 : vector<8x1xf32> to vector<8x256xf32>
    %27 = arith.mulf %26, %25 : vector<8x256xf32>
    %28 = arith.addf %18, %27 : vector<8x256xf32>
    %29 = vector.extract_strided_slice %2 {offsets = [16, 0], sizes = [8, 1], strides = [1, 1]} : vector<24x1xf32> to vector<8x1xf32>
    %30 = vector.extract_strided_slice %6 {offsets = [16, 0], sizes = [8, 256], strides = [1, 1]} : vector<24x256xf32> to vector<8x256xf32>
    %31 = vector.extract_strided_slice %1 {offsets = [16, 0], sizes = [8, 1], strides = [1, 1]} : vector<24x1xf32> to vector<8x1xf32>
    %32 = vector.broadcast %31 : vector<8x1xf32> to vector<8x256xf32>
    %33 = arith.addf %30, %32 : vector<8x256xf32>
    %cst_12 = arith.constant 0.000000e+00 : f32
    %34 = vector.broadcast %cst_12 : f32 to vector<8x256xf32>
    %35 = arith.maximumf %33, %34 : vector<8x256xf32>
    %36 = vector.broadcast %29 : vector<8x1xf32> to vector<8x256xf32>
    %37 = arith.mulf %36, %35 : vector<8x256xf32>
    %38 = arith.addf %28, %37 : vector<8x256xf32>
    %c0_13 = arith.constant 0 : index
    %c0_14 = arith.constant 0 : index
    %c0_15 = arith.constant 0 : index
    %39 = vector.load %arg7[%c0_13, %c0_14, %c0_15] : memref<2x8x256xf32, #tpu.memory_space<vmem>>, vector<1x8x256xf32>
    %40 = vector.shape_cast %39 : vector<1x8x256xf32> to vector<8x256xf32>
    %41 = vector.shape_cast %38 : vector<8x256xf32> to vector<1x8x256xf32>
    tpu.vector_store %arg7[%c0_13, %c0_14, %c0_15], %41 {strides = array<i32>} : memref<2x8x256xf32, #tpu.memory_space<vmem>>, vector<1x8x256xf32>,
    %c1 = arith.constant 1 : index
    %c0_16 = arith.constant 0 : index
    %c0_17 = arith.constant 0 : index
    %42 = vector.load %arg2[%c1, %c0_16, %c0_17] : memref<2x8x256xf32, #tpu.memory_space<vmem>>, vector<1x8x256xf32>
    %43 = vector.shape_cast %42 : vector<1x8x256xf32> to vector<8x256xf32>
    %cst_18 = arith.constant dense<0.000000e+00> : vector<24x256xf32>
    %44 = tpu.matmul %0, %43, %cst_18 {dimension_numbers = #tpu.dot_dimension_numbers<[1], [0], [0], [1], [0, 0, 1, 1], [], []>} : vector<24x8xf32>, vector<8x256xf32>, vector<24x256xf32> -> vector<24x256xf32>
    %45 = vector.broadcast %3 : vector<8x1xf32> to vector<8x256xf32>
    %46 = arith.mulf %45, %43 : vector<8x256xf32>
    %47 = vector.extract_strided_slice %2 {offsets = [0, 0], sizes = [8, 1], strides = [1, 1]} : vector<24x1xf32> to vector<8x1xf32>
    %48 = vector.extract_strided_slice %44 {offsets = [0, 0], sizes = [8, 256], strides = [1, 1]} : vector<24x256xf32> to vector<8x256xf32>
    %49 = vector.extract_strided_slice %1 {offsets = [0, 0], sizes = [8, 1], strides = [1, 1]} : vector<24x1xf32> to vector<8x1xf32>
    %50 = vector.broadcast %49 : vector<8x1xf32> to vector<8x256xf32>
    %51 = arith.addf %48, %50 : vector<8x256xf32>
    %cst_19 = arith.constant 0.000000e+00 : f32
    %52 = vector.broadcast %cst_19 : f32 to vector<8x256xf32>
    %53 = arith.maximumf %51, %52 : vector<8x256xf32>
    %54 = vector.broadcast %47 : vector<8x1xf32> to vector<8x256xf32>
    %55 = arith.mulf %54, %53 : vector<8x256xf32>
    %56 = arith.addf %46, %55 : vector<8x256xf32>
    %57 = vector.extract_strided_slice %2 {offsets = [8, 0], sizes = [8, 1], strides = [1, 1]} : vector<24x1xf32> to vector<8x1xf32>
    %58 = vector.extract_strided_slice %44 {offsets = [8, 0], sizes = [8, 256], strides = [1, 1]} : vector<24x256xf32> to vector<8x256xf32>
    %59 = vector.extract_strided_slice %1 {offsets = [8, 0], sizes = [8, 1], strides = [1, 1]} : vector<24x1xf32> to vector<8x1xf32>
    %60 = vector.broadcast %59 : vector<8x1xf32> to vector<8x256xf32>
    %61 = arith.addf %58, %60 : vector<8x256xf32>
    %cst_20 = arith.constant 0.000000e+00 : f32
    %62 = vector.broadcast %cst_20 : f32 to vector<8x256xf32>
    %63 = arith.maximumf %61, %62 : vector<8x256xf32>
    %64 = vector.broadcast %57 : vector<8x1xf32> to vector<8x256xf32>
    %65 = arith.mulf %64, %63 : vector<8x256xf32>
    %66 = arith.addf %56, %65 : vector<8x256xf32>
    %67 = vector.extract_strided_slice %2 {offsets = [16, 0], sizes = [8, 1], strides = [1, 1]} : vector<24x1xf32> to vector<8x1xf32>
    %68 = vector.extract_strided_slice %44 {offsets = [16, 0], sizes = [8, 256], strides = [1, 1]} : vector<24x256xf32> to vector<8x256xf32>
    %69 = vector.extract_strided_slice %1 {offsets = [16, 0], sizes = [8, 1], strides = [1, 1]} : vector<24x1xf32> to vector<8x1xf32>
    %70 = vector.broadcast %69 : vector<8x1xf32> to vector<8x256xf32>
    %71 = arith.addf %68, %70 : vector<8x256xf32>
    %cst_21 = arith.constant 0.000000e+00 : f32
    %72 = vector.broadcast %cst_21 : f32 to vector<8x256xf32>
    %73 = arith.maximumf %71, %72 : vector<8x256xf32>
    %74 = vector.broadcast %67 : vector<8x1xf32> to vector<8x256xf32>
    %75 = arith.mulf %74, %73 : vector<8x256xf32>
    %76 = arith.addf %66, %75 : vector<8x256xf32>
    %c1_22 = arith.constant 1 : index
    %c0_23 = arith.constant 0 : index
    %c0_24 = arith.constant 0 : index
    %77 = vector.load %arg7[%c1_22, %c0_23, %c0_24] : memref<2x8x256xf32, #tpu.memory_space<vmem>>, vector<1x8x256xf32>
    %78 = vector.shape_cast %77 : vector<1x8x256xf32> to vector<8x256xf32>
    %79 = vector.shape_cast %76 : vector<8x256xf32> to vector<1x8x256xf32>
    tpu.vector_store %arg7[%c1_22, %c0_23, %c0_24], %79 {strides = array<i32>} : memref<2x8x256xf32, #tpu.memory_space<vmem>>, vector<1x8x256xf32>,
    return
  }
  func.func @transform_0(%arg0: i32, %arg1: i32) -> (i32, i32, i32) {
    %c0_i32 = arith.constant 0 : i32
    %c0_i32_0 = arith.constant 0 : i32
    return %arg0, %c0_i32, %arg1 : i32, i32, i32
  }
  func.func @transform_1(%arg0: i32, %arg1: i32) -> (i32, i32) {
    %c0_i32 = arith.constant 0 : i32
    %c0_i32_0 = arith.constant 0 : i32
    %c0_i32_1 = arith.constant 0 : i32
    return %c0_i32, %c0_i32_0 : i32, i32
  }
  func.func @transform_2(%arg0: i32, %arg1: i32) -> (i32, i32) {
    %c0_i32 = arith.constant 0 : i32
    %c0_i32_0 = arith.constant 0 : i32
    %c0_i32_1 = arith.constant 0 : i32
    return %c0_i32, %c0_i32_0 : i32, i32
  }
  func.func @transform_3(%arg0: i32, %arg1: i32) -> (i32, i32) {
    %c0_i32 = arith.constant 0 : i32
    %c0_i32_0 = arith.constant 0 : i32
    %c0_i32_1 = arith.constant 0 : i32
    return %c0_i32, %c0_i32_0 : i32, i32
  }
  func.func @transform_4(%arg0: i32, %arg1: i32) -> (i32, i32) {
    %c0_i32 = arith.constant 0 : i32
    %c0_i32_0 = arith.constant 0 : i32
    %c0_i32_1 = arith.constant 0 : i32
    return %c0_i32, %c0_i32_0 : i32, i32
  }
  func.func @transform_5(%arg0: i32, %arg1: i32) -> (i32, i32, i32) {
    %c0_i32 = arith.constant 0 : i32
    %c0_i32_0 = arith.constant 0 : i32
    return %arg0, %c0_i32, %arg1 : i32, i32, i32
  }
}

</mosaic_0001>

<llo_original>
// kernel: mixed_op_forward.1
$region0: #{mixed_op_forward.1}
  #allocation0 [shape = 'u32[]', space=smem, size = 0x4, offset = 0x4, fixed_abs, tag = 'smem constant byte address 0x4 - core index']
  #allocation1 [shape = 'u32[144,128]{1,0:T(1,128)}', space=vmem, size = 0x12000, scoped, tag = 'internal scratch']
  %s0 = inlined_call_operand.vmem [shape: f32[4,8,256], index: 0, kind: input, shape index: {}]
  %s1 = inlined_call_operand.vmem [shape: f32[24,8], index: 1, kind: input, shape index: {}]
  %s2 = inlined_call_operand.vmem [shape: f32[24,1], index: 2, kind: input, shape index: {}]
  %s3 = inlined_call_operand.vmem [shape: f32[24,1], index: 3, kind: input, shape index: {}]
  %s4 = inlined_call_operand.vmem [shape: f32[8,1], index: 4, kind: input, shape index: {}]
  %s5 = inlined_call_operand.vmem [shape: f32[4,8,256], index: 5, kind: output, shape index: {}]
  %s6 = sld [smem:[#allocation0]]
  $region53: #{mixed_op_forward.1} parent=0
    _
  %s8 = ssub.s32 1, %s6
  %s9 = scalar_select 0, %s8, %s6
  loop: start=0, step=1, limit=4
  $region2: #{mixed_op_forward.1} parent=0 // loop_pre_header
    _
  $region3: #{mixed_op_forward.1} parent=0 // loop_header
    %s11 = sphi 0, %s15
    %p12 = scmp.ge.s32.totalorder %s11, 4
    %s18 = sphi 0, %s30
    %s19 = sphi 0, %s26
    %s20 = sphi 0, %s18
    %s21 = sphi 0, %s19
    %s22 = sphi 0, %s20
    %s23 = sphi 0, %s21
    %s35 = sphi 0, %s37
    %s38 = sphi 0, %s35
    %s39 = sphi 0, %s38
    %s55 = sphi 0, %s39
    %s59 = sphi 0, %s59
    %s61 = sphi 0, %s59
    %s62 = sphi 0, %s61
    %s76 = sphi 0, %s62
    %s80 = sphi 0, %s80
    %s82 = sphi 0, %s80
    %s83 = sphi 0, %s82
    %s97 = sphi 0, %s83
    %s101 = sphi 0, %s101
    %s103 = sphi 0, %s101
    %s104 = sphi 0, %s103
    %s118 = sphi 0, %s104
    %s122 = sphi 0, %s122
    %s124 = sphi 0, %s122
    %s125 = sphi 0, %s124
    %s139 = sphi 0, %s125
    %s147 = sphi 0, %s149
    %s150 = sphi 0, %s147
    %s151 = sphi 0, %s150
    %s167 = sphi 0, %s151
  $region4: #{mixed_op_forward.1} parent=0 // loop_header_branch
    %14 = sbr.rel (%p12) target = $region8
  $region5: #{mixed_op_forward.1} parent=0 // loop_body
    %s16 = ssub.s32 %s11, 1
    %s17 = ssub.s32 %s11, 2
    %s24 = sadd.s32 1, %s19
    %p25 = scmp.ge.s32.totalorder %s24, 1
    %s26 = scalar_select %p25, 0, %s24
    %s27 = sadd.s32 1, %s18
    %s28 = scalar_select %p25, %s27, %s18
    %p29 = scmp.ge.s32.totalorder %s28, 2
    %s30 = scalar_select %p29, 0, %s28
    %s31 = ssub.s32 %s18, %s30
    %s32 = ssub.s32 %s19, %s26
    %s33 = sor.u32 %s31, %s32
    %p34 = scmp.eq.s32.totalorder %s33, 0
    %s36 = sadd.s32 %s35, 1
    %s37 = scalar_select %p34, %s35, %s36
    %p40 = pneg %p34
    %p41 = scmp.eq.s32.totalorder %s11, 1
    %p42 = por %p40, %p41
    %p43 = scmp.ne.s32.totalorder %s35, %s38
    %p44 = scmp.eq.s32.totalorder %s11, 0
    %p45 = por %p43, %p44
    %p46 = scmp.ne.s32.totalorder %s35, %s38
    %p47 = scmp.eq.s32.totalorder %s16, 1
    %p48 = por %p46, %p47
    %p49 = scmp.ne.s32.totalorder %s38, %s39
    %p50 = scmp.eq.s32.totalorder %s16, 0
    %p51 = por %p49, %p50
    %p52 = scmp.ne.s32.totalorder %s38, %s39
    %p53 = scmp.eq.s32.totalorder %s17, 1
    %p54 = por %p52, %p53
    %p56 = scmp.ne.s32.totalorder %s39, %s55
    %p57 = scmp.eq.s32.totalorder %s17, 0
    %p58 = por %p56, %p57
    %s60 = sadd.s32 %s59, 1
    %p63 = scmp.eq.s32.totalorder %s11, 1
    %p64 = scmp.ne.s32.totalorder %s59, %s61
    %p65 = scmp.eq.s32.totalorder %s11, 0
    %p66 = por %p64, %p65
    %p67 = scmp.ne.s32.totalorder %s59, %s61
    %p68 = scmp.eq.s32.totalorder %s16, 1
    %p69 = por %p67, %p68
    %p70 = scmp.ne.s32.totalorder %s61, %s62
    %p71 = scmp.eq.s32.totalorder %s16, 0
    %p72 = por %p70, %p71
    %p73 = scmp.ne.s32.totalorder %s61, %s62
    %p74 = scmp.eq.s32.totalorder %s17, 1
    %p75 = por %p73, %p74
    %p77 = scmp.ne.s32.totalorder %s62, %s76
    %p78 = scmp.eq.s32.totalorder %s17, 0
    %p79 = por %p77, %p78
    %s81 = sadd.s32 %s80, 1
    %p84 = scmp.eq.s32.totalorder %s11, 1
    %p85 = scmp.ne.s32.totalorder %s80, %s82
    %p86 = scmp.eq.s32.totalorder %s11, 0
    %p87 = por %p85, %p86
    %p88 = scmp.ne.s32.totalorder %s80, %s82
    %p89 = scmp.eq.s32.totalorder %s16, 1
    %p90 = por %p88, %p89
    %p91 = scmp.ne.s32.totalorder %s82, %s83
    %p92 = scmp.eq.s32.totalorder %s16, 0
    %p93 = por %p91, %p92
    %p94 = scmp.ne.s32.totalorder %s82, %s83
    %p95 = scmp.eq.s32.totalorder %s17, 1
    %p96 = por %p94, %p95
    %p98 = scmp.ne.s32.totalorder %s83, %s97
    %p99 = scmp.eq.s32.totalorder %s17, 0
    %p100 = por %p98, %p99
    %s102 = sadd.s32 %s101, 1
    %p105 = scmp.eq.s32.totalorder %s11, 1
    %p106 = scmp.ne.s32.totalorder %s101, %s103
    %p107 = scmp.eq.s32.totalorder %s11, 0
    %p108 = por %p106, %p107
    %p109 = scmp.ne.s32.totalorder %s101, %s103
    %p110 = scmp.eq.s32.totalorder %s16, 1
    %p111 = por %p109, %p110
    %p112 = scmp.ne.s32.totalorder %s103, %s104
    %p113 = scmp.eq.s32.totalorder %s16, 0
    %p114 = por %p112, %p113
    %p115 = scmp.ne.s32.totalorder %s103, %s104
    %p116 = scmp.eq.s32.totalorder %s17, 1
    %p117 = por %p115, %p116
    %p119 = scmp.ne.s32.totalorder %s104, %s118
    %p120 = scmp.eq.s32.totalorder %s17, 0
    %p121 = por %p119, %p120
    %s123 = sadd.s32 %s122, 1
    %p126 = scmp.eq.s32.totalorder %s11, 1
    %p127 = scmp.ne.s32.totalorder %s122, %s124
    %p128 = scmp.eq.s32.totalorder %s11, 0
    %p129 = por %p127, %p128
    %p130 = scmp.ne.s32.totalorder %s122, %s124
    %p131 = scmp.eq.s32.totalorder %s16, 1
    %p132 = por %p130, %p131
    %p133 = scmp.ne.s32.totalorder %s124, %s125
    %p134 = scmp.eq.s32.totalorder %s16, 0
    %p135 = por %p133, %p134
    %p136 = scmp.ne.s32.totalorder %s124, %s125
    %p137 = scmp.eq.s32.totalorder %s17, 1
    %p138 = por %p136, %p137
    %p140 = scmp.ne.s32.totalorder %s125, %s139
    %p141 = scmp.eq.s32.totalorder %s17, 0
    %p142 = por %p140, %p141
    %s143 = ssub.s32 %s18, %s30
    %s144 = ssub.s32 %s19, %s26
    %s145 = sor.u32 %s143, %s144
    %p146 = scmp.eq.s32.totalorder %s145, 0
    %s148 = sadd.s32 %s147, 1
    %s149 = scalar_select %p146, %s147, %s148
    %p152 = pneg %p146
    %p153 = scmp.eq.s32.totalorder %s11, 1
    %p154 = por %p152, %p153
    %p155 = scmp.ne.s32.totalorder %s147, %s150
    %p156 = scmp.eq.s32.totalorder %s11, 0
    %p157 = por %p155, %p156
    %p158 = scmp.ne.s32.totalorder %s147, %s150
    %p159 = scmp.eq.s32.totalorder %s16, 1
    %p160 = por %p158, %p159
    %p161 = scmp.ne.s32.totalorder %s150, %s151
    %p162 = scmp.eq.s32.totalorder %s16, 0
    %p163 = por %p161, %p162
    %p164 = scmp.ne.s32.totalorder %s150, %s151
    %p165 = scmp.eq.s32.totalorder %s17, 1
    %p166 = por %p164, %p165
    %p168 = scmp.ne.s32.totalorder %s151, %s167
    %p169 = scmp.eq.s32.totalorder %s17, 0
    %p170 = por %p168, %p169
    %p171 = scmp.le.s32.totalorder 1, %s11
    %p172 = scmp.lt.s32.totalorder %s11, 3
    %p173 = pnand %p171, %p172
    %p174 = pneg %p173
    // Predicated region
    $region9: #{mixed_op_forward.1} parent=5 // pred_check
      _
    $region10: #{mixed_op_forward.1} parent=5 // pred_check_branch
      %176 = sbr.rel (%p173) target = $region12
    $region11: #{mixed_op_forward.1} parent=5 // pred_region
      %s177 = ssub.s32 %s11, 1
      // Predicated region
      $region13: #{mixed_op_forward.1} parent=11 // pred_check
        %p178 = pneg %p72
      $region14: #{mixed_op_forward.1} parent=11 // pred_check_branch
        %180 = sbr.rel (%p178) target = $region16
      $region15: #{mixed_op_forward.1} parent=11 // pred_region
        _
      $region16: #{mixed_op_forward.1} parent=11 // pred_fallthru
        _
      // Predicated region
      $region17: #{mixed_op_forward.1} parent=11 // pred_check
        %p181 = pneg %p93
      $region18: #{mixed_op_forward.1} parent=11 // pred_check_branch
        %183 = sbr.rel (%p181) target = $region20
      $region19: #{mixed_op_forward.1} parent=11 // pred_region
        _
      $region20: #{mixed_op_forward.1} parent=11 // pred_fallthru
        _
      // Predicated region
      $region21: #{mixed_op_forward.1} parent=11 // pred_check
        %p184 = pneg %p114
      $region22: #{mixed_op_forward.1} parent=11 // pred_check_branch
        %186 = sbr.rel (%p184) target = $region24
      $region23: #{mixed_op_forward.1} parent=11 // pred_region
        _
      $region24: #{mixed_op_forward.1} parent=11 // pred_fallthru
        _
      // Predicated region
      $region25: #{mixed_op_forward.1} parent=11 // pred_check
        %p187 = pneg %p135
      $region26: #{mixed_op_forward.1} parent=11 // pred_check_branch
        %189 = sbr.rel (%p187) target = $region28
      $region27: #{mixed_op_forward.1} parent=11 // pred_region
        _
      $region28: #{mixed_op_forward.1} parent=11 // pred_fallthru
        _
    $region12: #{mixed_op_forward.1} parent=5 // pred_fallthru
      _
    %p190 = scmp.lt.s32.totalorder %s11, 2
    // Predicated region
    $region29: #{mixed_op_forward.1} parent=5 // pred_check
      %p191 = pneg %p190
    $region30: #{mixed_op_forward.1} parent=5 // pred_check_branch
      %193 = sbr.rel (%p191) target = $region32
    $region31: #{mixed_op_forward.1} parent=5 // pred_region
      // Predicated region
      $region33: #{mixed_op_forward.1} parent=31 // pred_check
        %p194 = pneg %p45
      $region34: #{mixed_op_forward.1} parent=31 // pred_check_branch
        %196 = sbr.rel (%p194) target = $region36
      $region35: #{mixed_op_forward.1} parent=31 // pred_region
        %s197 = smul.u32 2, %s18
        %s198 = smul.u32 2, %s19
        %p199 = scmp.lt.s32.totalorder %s197, 3
        %s200 = scalar_select %p199, %s197, 3
        %p201 = scmp.lt.s32.totalorder %s198, 1
        %s202 = scalar_select %p201, %s198, 1
        %s203 = smul.addr %s200, 2
        %s204 = sadd.s32 %s202, %s203
        %s205 = smul.addr %s204, 8
        %s206 = scalar_lea.vmem %s0, %s205
        %s207 = smul.u32 2, %s18
        %s208 = smul.u32 2, %s19
      $region36: #{mixed_op_forward.1} parent=31 // pred_fallthru
        _
    $region32: #{mixed_op_forward.1} parent=5 // pred_fallthru
      _
    %p209 = scmp.le.s32.totalorder 1, %s11
    %p210 = scmp.lt.s32.totalorder %s11, 3
    %p211 = pnand %p209, %p210
    %p212 = pneg %p211
    // Predicated region
    $region37: #{mixed_op_forward.1} parent=5 // pred_check
      _
    $region38: #{mixed_op_forward.1} parent=5 // pred_check_branch
      %214 = sbr.rel (%p211) target = $region40
    $region39: #{mixed_op_forward.1} parent=5 // pred_region
      %s215 = ssub.s32 %s11, 1
      %s216 = smul.u32 2, %s20
      %s217 = smul.u32 2, %s21
      %p218 = scmp.lt.s32.totalorder %s216, 3
      %s219 = scalar_select %p218, %s216, 3
      %p220 = scmp.lt.s32.totalorder %s217, 1
      %s221 = scalar_select %p220, %s217, 1
      %s222 = smul.addr %s219, 2
      %s223 = sadd.s32 %s221, %s222
      %s224 = smul.addr %s223, 8
      %s225 = scalar_lea.vmem %s0, %s224
      %p226 = pneg %p51
      %p227 = pneg %p48
      %p228 = pneg %p72
      %p229 = pneg %p69
      %p230 = pneg %p93
      %p231 = pneg %p90
      %p232 = pneg %p114
      %p233 = pneg %p111
      %p234 = pneg %p135
      %p235 = pneg %p132
      %p236 = pneg %p163
      %p237 = pneg %p160
      %s238 = smul.u32 2, %s20
      %s239 = smul.u32 2, %s21
      %p240 = scmp.lt.s32.totalorder %s238, 3
      %s241 = scalar_select %p240, %s238, 3
      %p242 = scmp.lt.s32.totalorder %s239, 1
      %s243 = scalar_select %p242, %s239, 1
      %s244 = smul.addr %s241, 2
      %s245 = sadd.s32 %s243, %s244
      %s246 = smul.addr %s245, 8
      %s247 = scalar_lea.vmem %s5, %s246
      %s248 = smul.u32 2, %s20
      %s249 = smul.u32 2, %s21
      %p250 = scmp.lt.s32.totalorder %s248, 3
      %s251 = scalar_select %p250, %s248, 3
      %p252 = scmp.lt.s32.totalorder %s249, 1
      %s253 = scalar_select %p252, %s249, 1
      %s254 = smul.addr %s251, 2
      %s255 = sadd.s32 %s253, %s254
      %s256 = smul.addr %s255, 8
      %s257 = scalar_lea.vmem %s0, %s256
      %s258 = smul.u32 2, %s20
      %s259 = smul.u32 2, %s21
      %s260 = smul.u32 2, %s20
      %s261 = smul.u32 2, %s21
      %p262 = scmp.lt.s32.totalorder %s260, 3
      %s263 = scalar_select %p262, %s260, 3
      %p264 = scmp.lt.s32.totalorder %s261, 1
      %s265 = scalar_select %p264, %s261, 1
      %s266 = smul.addr %s263, 2
      %s267 = sadd.s32 %s265, %s266
      %s268 = smul.addr %s267, 8
      %s269 = scalar_lea.vmem %s5, %s268
      %s270 = smul.u32 2, %s20
      %s271 = smul.u32 2, %s21
      %v272 = vld [vmem:[%s1] sm:$0xff]
      %v273 = vld [vmem:[%s1 + $0x8] sm:$0xff]
      %v274 = vld [vmem:[%s1 + $0x10] sm:$0xff]
      %v275 = vld [vmem:[%s2] sm:$0xff]
      %v276 = vld [vmem:[%s2 + $0x8] sm:$0xff]
      %v277 = vld [vmem:[%s2 + $0x10] sm:$0xff]
      %v278 = vld [vmem:[%s3] sm:$0xff]
      %v279 = vld [vmem:[%s3 + $0x8] sm:$0xff]
      %v280 = vld [vmem:[%s3 + $0x10] sm:$0xff]
      %v281 = vld [vmem:[%s4] sm:$0xff]
      %v282 = vld [vmem:[%s257] sm:$0xff]
      %v283 = vld [vmem:[%s257 + $0x8] sm:$0xff]
      %vm284 = vcmask 64512
      %v286 = vsel %vm284, %v272, 0
      %v289 = vsel %vm284, %v273, 0
      %v292 = vsel %vm284, %v274, 0
      %294 = vmatprep.subr.mxu0 0.0
      %295 = vmatpush1.msra.mxu0 0.0
      %296 = vmatprep.subr.mxu0 0.0
      %297 = vmatpush1.msra.mxu0 0.0
      %298 = vmatprep.subr.mxu0 0.0
      %299 = vmatpush1.msra.mxu0 0.0
      %300 = vmatprep.subr.mxu0 0.0
      %301 = vmatpush1.msra.mxu0 0.0
      %302 = vmatprep.subr.mxu0 0.0
      %303 = vmatpush1.msra.mxu0 0.0
      %304 = vmatprep.subr.mxu0 0.0
      %305 = vmatpush1.msra.mxu0 0.0
      %306 = vmatprep.subr.mxu0 0.0
      %307 = vmatpush1.msra.mxu0 0.0
      %308 = vmatprep.subr.mxu0 0.0
      %309 = vmatpush1.msra.mxu0 0.0
      %310 = vmatprep.subr.mxu0 0.0
      %311 = vmatpush1.msra.mxu0 0.0
      %312 = vmatprep.subr.mxu0 0.0
      %313 = vmatpush1.msra.mxu0 0.0
      %314 = vmatprep.subr.mxu0 0.0
      %315 = vmatpush1.msra.mxu0 0.0
      %316 = vmatprep.subr.mxu0 0.0
      %317 = vmatpush1.msra.mxu0 0.0
      %318 = vmatprep.subr.mxu0 0.0
      %319 = vmatpush1.msra.mxu0 0.0
      %320 = vmatprep.subr.mxu0 0.0
      %321 = vmatpush1.msra.mxu0 0.0
      %322 = vmatprep.subr.mxu0 0.0
      %323 = vmatpush1.msra.mxu0 0.0
      %324 = vmatprep.subr.mxu0 %v283
      %325 = vmatpush1.msra.mxu0 %v282
      %326 = vmatprep.subr.mxu0 0.0
      %327 = vmatpush2.msra.mxu0 0.0
      %328 = vmatprep.subr.mxu0 0.0
      %329 = vmatpush2.msra.mxu0 0.0
      %330 = vmatprep.subr.mxu0 0.0
      %331 = vmatpush2.msra.mxu0 0.0
      %332 = vmatprep.subr.mxu0 0.0
      %333 = vmatpush2.msra.mxu0 0.0
      %334 = vmatprep.subr.mxu0 0.0
      %335 = vmatpush2.msra.mxu0 0.0
      %336 = vmatprep.subr.mxu0 0.0
      %337 = vmatpush2.msra.mxu0 0.0
      %338 = vmatprep.subr.mxu0 0.0
      %339 = vmatpush2.msra.mxu0 0.0
      %340 = vmatprep.subr.mxu0 0.0
      %341 = vmatpush2.msra.mxu0 0.0
      %342 = vmatprep.subr.mxu0 0.0
      %343 = vmatpush2.msra.mxu0 0.0
      %344 = vmatprep.subr.mxu0 0.0
      %345 = vmatpush2.msra.mxu0 0.0
      %346 = vmatprep.subr.mxu0 0.0
      %347 = vmatpush2.msra.mxu0 0.0
      %348 = vmatprep.subr.mxu0 0.0
      %349 = vmatpush2.msra.mxu0 0.0
      %350 = vmatprep.subr.mxu0 0.0
      %351 = vmatpush2.msra.mxu0 0.0
      %352 = vmatprep.subr.mxu0 0.0
      %353 = vmatpush2.msra.mxu0 0.0
      %354 = vmatprep.subr.mxu0 0.0
      %355 = vmatpush2.msra.mxu0 0.0
      %356 = vmatprep.subr.mxu0 0.0
      %357 = vmatpush2.msra.mxu0 0.0
      %358 = vmatprep.mubr.f32.mxu0 0.0
      %359 = vmatmul.mubr.f32.gmra.mxu0 %v286
      %v360 = vpop.f32.mrf.mxu0
      %v361 = vadd.f32 0.0, %v360
      %v362 = vpop.f32.mrf.mxu0
      %v363 = vadd.f32 0.0, %v362
      %364 = vmatprep.mubr.f32.mxu0 0.0
      %365 = vmatmul.mubr.f32.gmra.mxu0 %v289
      %v366 = vpop.f32.mrf.mxu0
      %v367 = vadd.f32 0.0, %v366
      %v368 = vpop.f32.mrf.mxu0
      %v369 = vadd.f32 0.0, %v368
      %370 = vmatprep.mubr.f32.mxu0 0.0
      %371 = vmatmul.mubr.f32.gmra.mxu0 %v292
      %v372 = vpop.f32.mrf.mxu0
      %v373 = vadd.f32 0.0, %v372
      %v374 = vpop.f32.mrf.mxu0
      %v375 = vadd.f32 0.0, %v374
      %376 = vdwg.mxu0
      %378 = vset.pattern.permute.xlu0 0
      %379 = vperm.xlu0 %378, %v281
      %v380 = vpop.permute.xlu0 %379
      %v382 = vmul.f32 %v380, %v282
      %v383 = vmul.f32 %v380, %v283
      %385 = vset.pattern.permute.xlu0 0
      %386 = vperm.xlu0 %385, %v275
      %v387 = vpop.permute.xlu0 %386
      %v389 = vadd.f32 %v361, %v387
      %v390 = vadd.f32 %v363, %v387
      %v391 = vmax.f32 %v389, 0.0
      %v392 = vmax.f32 %v390, 0.0
      %394 = vset.pattern.permute.xlu0 0
      %395 = vperm.xlu0 %394, %v278
      %v396 = vpop.permute.xlu0 %395
      %v398 = vmul.f32 %v396, %v391
      %v399 = vmul.f32 %v396, %v392
      %v400 = vadd.f32 %v382, %v398
      %v401 = vadd.f32 %v383, %v399
      %403 = vset.pattern.permute.xlu0 0
      %404 = vperm.xlu0 %403, %v276
      %v405 = vpop.permute.xlu0 %404
      %v407 = vadd.f32 %v367, %v405
      %v408 = vadd.f32 %v369, %v405
      %v409 = vmax.f32 %v407, 0.0
      %v410 = vmax.f32 %v408, 0.0
      %412 = vset.pattern.permute.xlu0 0
      %413 = vperm.xlu0 %412, %v279
      %v414 = vpop.permute.xlu0 %413
      %v416 = vmul.f32 %v414, %v409
      %v417 = vmul.f32 %v414, %v410
      %v418 = vadd.f32 %v400, %v416
      %v419 = vadd.f32 %v401, %v417
      %421 = vset.pattern.permute.xlu0 0
      %422 = vperm.xlu0 %421, %v277
      %v423 = vpop.permute.xlu0 %422
      %v425 = vadd.f32 %v373, %v423
      %v426 = vadd.f32 %v375, %v423
      %v427 = vmax.f32 %v425, 0.0
      %v428 = vmax.f32 %v426, 0.0
      %430 = vset.pattern.permute.xlu0 0
      %431 = vperm.xlu0 %430, %v280
      %v432 = vpop.permute.xlu0 %431
      %v434 = vmul.f32 %v432, %v427
      %v435 = vmul.f32 %v432, %v428
      %v436 = vadd.f32 %v418, %v434
      %v437 = vadd.f32 %v419, %v435
      %438 = vst [vmem:[%s269] sm:$0xff] %v436
      %439 = vst [vmem:[%s269 + $0x8] sm:$0xff] %v437
      %s440 = scalar_lea.vmem %s257, 16
      %v441 = vld [vmem:[%s440] sm:$0xff]
      %v442 = vld [vmem:[%s440 + $0x8] sm:$0xff]
      %443 = vmatprep.subr.mxu0 0.0
      %444 = vmatpush1.msra.mxu0 0.0
      %445 = vmatprep.subr.mxu0 0.0
      %446 = vmatpush1.msra.mxu0 0.0
      %447 = vmatprep.subr.mxu0 0.0
      %448 = vmatpush1.msra.mxu0 0.0
      %449 = vmatprep.subr.mxu0 0.0
      %450 = vmatpush1.msra.mxu0 0.0
      %451 = vmatprep.subr.mxu0 0.0
      %452 = vmatpush1.msra.mxu0 0.0
      %453 = vmatprep.subr.mxu0 0.0
      %454 = vmatpush1.msra.mxu0 0.0
      %455 = vmatprep.subr.mxu0 0.0
      %456 = vmatpush1.msra.mxu0 0.0
      %457 = vmatprep.subr.mxu0 0.0
      %458 = vmatpush1.msra.mxu0 0.0
      %459 = vmatprep.subr.mxu0 0.0
      %460 = vmatpush1.msra.mxu0 0.0
      %461 = vmatprep.subr.mxu0 0.0
      %462 = vmatpush1.msra.mxu0 0.0
      %463 = vmatprep.subr.mxu0 0.0
      %464 = vmatpush1.msra.mxu0 0.0
      %465 = vmatprep.subr.mxu0 0.0
      %466 = vmatpush1.msra.mxu0 0.0
      %467 = vmatprep.subr.mxu0 0.0
      %468 = vmatpush1.msra.mxu0 0.0
      %469 = vmatprep.subr.mxu0 0.0
      %470 = vmatpush1.msra.mxu0 0.0
      %471 = vmatprep.subr.mxu0 0.0
      %472 = vmatpush1.msra.mxu0 0.0
      %473 = vmatprep.subr.mxu0 %v442
      %474 = vmatpush1.msra.mxu0 %v441
      %475 = vmatprep.subr.mxu0 0.0
      %476 = vmatpush2.msra.mxu0 0.0
      %477 = vmatprep.subr.mxu0 0.0
      %478 = vmatpush2.msra.mxu0 0.0
      %479 = vmatprep.subr.mxu0 0.0
      %480 = vmatpush2.msra.mxu0 0.0
      %481 = vmatprep.subr.mxu0 0.0
      %482 = vmatpush2.msra.mxu0 0.0
      %483 = vmatprep.subr.mxu0 0.0
      %484 = vmatpush2.msra.mxu0 0.0
      %485 = vmatprep.subr.mxu0 0.0
      %486 = vmatpush2.msra.mxu0 0.0
      %487 = vmatprep.subr.mxu0 0.0
      %488 = vmatpush2.msra.mxu0 0.0
      %489 = vmatprep.subr.mxu0 0.0
      %490 = vmatpush2.msra.mxu0 0.0
      %491 = vmatprep.subr.mxu0 0.0
      %492 = vmatpush2.msra.mxu0 0.0
      %493 = vmatprep.subr.mxu0 0.0
      %494 = vmatpush2.msra.mxu0 0.0
      %495 = vmatprep.subr.mxu0 0.0
      %496 = vmatpush2.msra.mxu0 0.0
      %497 = vmatprep.subr.mxu0 0.0
      %498 = vmatpush2.msra.mxu0 0.0
      %499 = vmatprep.subr.mxu0 0.0
      %500 = vmatpush2.msra.mxu0 0.0
      %501 = vmatprep.subr.mxu0 0.0
      %502 = vmatpush2.msra.mxu0 0.0
      %503 = vmatprep.subr.mxu0 0.0
      %504 = vmatpush2.msra.mxu0 0.0
      %505 = vmatprep.subr.mxu0 0.0
      %506 = vmatpush2.msra.mxu0 0.0
      %507 = vmatprep.mubr.f32.mxu0 0.0
      %508 = vmatmul.mubr.f32.gmra.mxu0 %v286
      %v509 = vpop.f32.mrf.mxu0
      %v510 = vadd.f32 0.0, %v509
      %v511 = vpop.f32.mrf.mxu0
      %v512 = vadd.f32 0.0, %v511
      %513 = vmatprep.mubr.f32.mxu0 0.0
      %514 = vmatmul.mubr.f32.gmra.mxu0 %v289
      %v515 = vpop.f32.mrf.mxu0
      %v516 = vadd.f32 0.0, %v515
      %v517 = vpop.f32.mrf.mxu0
      %v518 = vadd.f32 0.0, %v517
      %519 = vmatprep.mubr.f32.mxu0 0.0
      %520 = vmatmul.mubr.f32.gmra.mxu0 %v292
      %v521 = vpop.f32.mrf.mxu0
      %v522 = vadd.f32 0.0, %v521
      %v523 = vpop.f32.mrf.mxu0
      %v524 = vadd.f32 0.0, %v523
      %525 = vdwg.mxu0
      %v526 = vmul.f32 %v380, %v441
      %v527 = vmul.f32 %v380, %v442
      %v528 = vadd.f32 %v510, %v387
      %v529 = vadd.f32 %v512, %v387
      %v530 = vmax.f32 %v528, 0.0
      %v531 = vmax.f32 %v529, 0.0
      %v532 = vmul.f32 %v396, %v530
      %v533 = vmul.f32 %v396, %v531
      %v534 = vadd.f32 %v526, %v532
      %v535 = vadd.f32 %v527, %v533
      %v536 = vadd.f32 %v516, %v405
      %v537 = vadd.f32 %v518, %v405
      %v538 = vmax.f32 %v536, 0.0
      %v539 = vmax.f32 %v537, 0.0
      %v540 = vmul.f32 %v414, %v538
      %v541 = vmul.f32 %v414, %v539
      %v542 = vadd.f32 %v534, %v540
      %v543 = vadd.f32 %v535, %v541
      %v544 = vadd.f32 %v522, %v423
      %v545 = vadd.f32 %v524, %v423
      %v546 = vmax.f32 %v544, 0.0
      %v547 = vmax.f32 %v545, 0.0
      %v548 = vmul.f32 %v432, %v546
      %v549 = vmul.f32 %v432, %v547
      %v550 = vadd.f32 %v542, %v548
      %v551 = vadd.f32 %v543, %v549
      %s552 = scalar_lea.vmem %s269, 16
      %553 = vst [vmem:[%s552] sm:$0xff] %v550
      %554 = vst [vmem:[%s552 + $0x8] sm:$0xff] %v551
      %s555 = smul.u32 2, %s20
      %s556 = smul.u32 2, %s21
      %p557 = scmp.lt.s32.totalorder %s555, 3
      %s558 = scalar_select %p557, %s555, 3
      %p559 = scmp.lt.s32.totalorder %s556, 1
      %s560 = scalar_select %p559, %s556, 1
      %s561 = smul.addr %s558, 2
      %s562 = sadd.s32 %s560, %s561
      %s563 = smul.addr %s562, 8
      %s564 = scalar_lea.vmem %s5, %s563
      // Predicated region
      $region41: #{mixed_op_forward.1} parent=39 // pred_check
        %p565 = pneg %p160
      $region42: #{mixed_op_forward.1} parent=39 // pred_check_branch
        %567 = sbr.rel (%p565) target = $region44
      $region43: #{mixed_op_forward.1} parent=39 // pred_region
        %s568 = smul.u32 2, %s20
        %s569 = smul.u32 2, %s21
      $region44: #{mixed_op_forward.1} parent=39 // pred_fallthru
        _
    $region40: #{mixed_op_forward.1} parent=5 // pred_fallthru
      _
    %p570 = scmp.le.s32.totalorder 2, %s11
    // Predicated region
    $region45: #{mixed_op_forward.1} parent=5 // pred_check
      %p571 = pneg %p570
    $region46: #{mixed_op_forward.1} parent=5 // pred_check_branch
      %573 = sbr.rel (%p571) target = $region48
    $region47: #{mixed_op_forward.1} parent=5 // pred_region
      %s574 = ssub.s32 %s11, 2
      // Predicated region
      $region49: #{mixed_op_forward.1} parent=47 // pred_check
        %p575 = pneg %p166
      $region50: #{mixed_op_forward.1} parent=47 // pred_check_branch
        %577 = sbr.rel (%p575) target = $region52
      $region51: #{mixed_op_forward.1} parent=47 // pred_region
        %s578 = smul.u32 2, %s22
        %s579 = smul.u32 2, %s23
        %p580 = scmp.lt.s32.totalorder %s578, 3
        %s581 = scalar_select %p580, %s578, 3
        %p582 = scmp.lt.s32.totalorder %s579, 1
        %s583 = scalar_select %p582, %s579, 1
        %s584 = smul.addr %s581, 2
        %s585 = sadd.s32 %s583, %s584
        %s586 = smul.addr %s585, 8
        %s587 = scalar_lea.vmem %s5, %s586
      $region52: #{mixed_op_forward.1} parent=47 // pred_fallthru
        _
    $region48: #{mixed_op_forward.1} parent=5 // pred_fallthru
      _
  $region6: #{mixed_op_forward.1} parent=0 // loop_footer
    %s15 = sadd.s32 1, %s11
  $region7: #{mixed_op_forward.1} parent=0 // loop_footer_branch
    %10 = sbr.rel target = $region3
  $region8: #{mixed_op_forward.1} parent=0 // loop_exit
    _

</llo_original>
